<compile_context>
chip_gen: v7x
topology: tpu7x:2x2x1
jax: 0.10.0
libtpu: 0.0.40
codegen_flags: <defaults>
</compile_context>

<pallas_src>
import jax
import jax.numpy as jnp
from jax import lax
from jax.experimental import pallas as pl
from jax.experimental.pallas import tpu as pltpu


# Safe on v7x (64 MiB physical VMEM); can be raised to ~100 MiB on v5e/v6e for
# larger tiles/chunks.
_VMEM_LIMIT_BYTES = 64 * 1024 * 1024


# ----------------------------------------------------------------------------
# Small helpers.
# ----------------------------------------------------------------------------
def _ceil_to(a, m):
    return ((a + m - 1) // m) * m


def _pick_tile(total, cap, quantum):
    """Largest multiple of `quantum` that divides `total` and is <= cap
    (total is assumed to be a multiple of quantum)."""
    t = max(quantum, (min(cap, total) // quantum) * quantum)
    while total % t:
        t -= quantum
    return t


def _seq_chunk(s, cap=32):
    t = min(s, cap)
    while s % t:
        t -= 1
    return t


def _weight_spec(block_shape, index_map, single_buffer):
    """BlockSpec for a grid-invariant operand.  Single-buffering (Buffered(1))
    halves its resident VMEM; fall back to default double-buffering when the
    installed JAX doesn't accept pipeline_mode."""
    if single_buffer and hasattr(pl, "Buffered"):
        try:
            return pl.BlockSpec(block_shape, index_map, pipeline_mode=pl.Buffered(1))
        except TypeError:
            pass
    return pl.BlockSpec(block_shape, index_map)


def _call_with_fallback(build, *args):
    """Try the single-buffered-weights variant first; retry with default
    double-buffering if this JAX/Mosaic build rejects it."""
    try:
        return build(True)(*args)
    except Exception:  # noqa: BLE001 - genuine errors re-raise from the retry.
        return build(False)(*args)


# ----------------------------------------------------------------------------
# Parallel matmul + bias kernel (hoisted input projections and output head).
# ----------------------------------------------------------------------------
def _matmul_bias_kernel(x_ref, w_ref, b_ref, o_ref):
    o_ref[...] = (
        jnp.dot(x_ref[...], w_ref[...], preferred_element_type=jnp.float32)
        + b_ref[...]
    ).astype(o_ref.dtype)


def matmul_bias(x2d, w, b, *, out_dtype=jnp.float32, tm=512, tn=512):
    """(M, K) @ (K, N) + (1, N) -> (M, N) in out_dtype.
    Parallel grid over (M tiles, N tiles); N must be a multiple of 128 (caller pads).
    No K-tiling: K here is feat_size or hidden_size and fits comfortably."""
    M, K = x2d.shape
    N = w.shape[1]
    Mp = _ceil_to(M, 8)            # sublane alignment
    tm = min(tm, Mp)               # tm is a multiple of 8 or the full extent
    Mp = _ceil_to(Mp, tm)
    if Mp != M:
        x2d = jnp.pad(x2d, ((0, Mp - M), (0, 0)))
    tn = _pick_tile(N, tn, 128)
    n_tiles = N // tn

    def build(single_buffer):
        sb = single_buffer and n_tiles == 1   # weight is grid-invariant only then
        return pl.pallas_call(
            _matmul_bias_kernel,
            out_shape=jax.ShapeDtypeStruct((Mp, N), out_dtype),
            grid_spec=pltpu.PrefetchScalarGridSpec(
                num_scalar_prefetch=0,
                grid=(Mp // tm, n_tiles),
                in_specs=[
                    pl.BlockSpec((tm, K), lambda i, j: (i, 0)),
                    _weight_spec((K, tn), lambda i, j: (0, j), sb),
                    _weight_spec((1, tn), lambda i, j: (0, j), sb),
                ],
                out_specs=pl.BlockSpec((tm, tn), lambda i, j: (i, j)),
            ),
            compiler_params=pltpu.CompilerParams(
                dimension_semantics=("parallel", "parallel"),
                vmem_limit_bytes=_VMEM_LIMIT_BYTES,
            ),
        )

    out = _call_with_fallback(build, x2d, w, b)
    return out[:M]


# ----------------------------------------------------------------------------
# Sequential recurrence kernel.
#   gin_ref : (T, TB, 3Hp) bf16  precomputed x-side gate inputs (wrx|wx1|wux order)
#   wh_ref  : (Hp, 3Hp)    bf16  fused hidden weights          (wrh|wh1|wuh order)
#   hout_ref: (T, TB, Hp)        per-timestep hidden state (compute dtype)
#   h_ref   : (TB, Hp)     f32   VMEM scratch carrying h across grid steps
# ----------------------------------------------------------------------------
def gru_recurrent_kernel(gin_ref, wh_ref, hout_ref, h_ref):
    @pl.when(pl.program_id(1) == 0)          # new batch tile -> reset hidden state
    def _():
        h_ref[...] = jnp.zeros_like(h_ref)

    T, TB, _ = gin_ref.shape
    H = wh_ref.shape[0]

    def step(t, h):
        g = gin_ref[t].astype(jnp.float32)                    # (TB, 3H) bf16 -> f32
        hh = jnp.dot(h.astype(wh_ref.dtype), wh_ref[...],     # single fused MXU push
                     preferred_element_type=jnp.float32)      # (TB, 3H) f32
        gr = jax.nn.sigmoid(g[:, :H] + hh[:, :H])             # reset gate
        gu = jax.nn.sigmoid(g[:, 2 * H:] + hh[:, 2 * H:])     # update gate
        r = jnp.tanh(gr * hh[:, H:2 * H] + g[:, H:2 * H])     # candidate
        h_new = r + gu * (h - r)                               # == r*(1-gu) + gu*h
        hout_ref[t] = h_new.astype(hout_ref.dtype)
        return h_new

    # Bounded unroll: full unroll while live g/hh/gate intermediates are a few
    # vregs; cap at 8 once they'd force vreg spills onto the serial path.
    live_bytes = TB * 3 * H * 4
    unroll = T if live_bytes <= 64 * 1024 else min(8, T)
    h_final = lax.fori_loop(0, T, step, h_ref[...], unroll=unroll)
    h_ref[...] = h_final


def gru_recurrence(gin, w_h, *, out_dtype, seq_chunk=None, batch_tile=None):
    S, B, H3 = gin.shape
    H = w_h.shape[0]
    T = seq_chunk or _seq_chunk(S, cap=32)
    if batch_tile:
        TB = batch_tile                      # caller guarantees TB | B and TB % 8 == 0
    elif B % 16 == 0:
        TB = B // 2                          # >=2 batch tiles -> both v7x TensorCores
    else:
        TB = B

    def build(single_buffer):
        return pl.pallas_call(
            gru_recurrent_kernel,
            out_shape=jax.ShapeDtypeStruct((S, B, H), out_dtype),
            grid_spec=pltpu.PrefetchScalarGridSpec(
                num_scalar_prefetch=0,
                grid=(B // TB, S // T),
                in_specs=[
                    pl.BlockSpec((T, TB, H3), lambda bi, j: (j, bi, 0)),
                    _weight_spec((H, H3), lambda bi, j: (0, 0), single_buffer),
                ],
                out_specs=pl.BlockSpec((T, TB, H), lambda bi, j: (j, bi, 0)),
                scratch_shapes=[pltpu.VMEM((TB, H), jnp.float32)],
            ),
            compiler_params=pltpu.CompilerParams(
                # seq axis must stay the inner "arbitrary" axis (h carry invariant)
                dimension_semantics=("parallel", "arbitrary"),
                vmem_limit_bytes=_VMEM_LIMIT_BYTES,
            ),
        )

    return _call_with_fallback(build, gin, w_h)


# ----------------------------------------------------------------------------
# One-time parameter preparation: fuse, pad H->Hp and C->Cp (multiples of 128),
# cast MXU operands to bf16.  Zero padding keeps padded hidden lanes exactly 0
# for every timestep, so results are bit-identical to the unpadded math.
# ----------------------------------------------------------------------------
def prepare_params(params, *, compute_dtype=jnp.bfloat16):
    H = params["wrh_t"].shape[0]
    C = params["wfc_t"].shape[1]
    Hp = _ceil_to(H, 128)
    Cp = _ceil_to(C, 128)
    padc = lambda a, n: jnp.pad(a, ((0, 0), (0, n - a.shape[1])))
    padr = lambda a, n: jnp.pad(a, ((0, n - a.shape[0]), (0, 0)))

    w_in = jnp.concatenate(
        [padc(params["wrx_t"], Hp), padc(params["wx1_t"], Hp),
         padc(params["wux_t"], Hp)], axis=1).astype(compute_dtype)        # (F, 3Hp)
    b_in = jnp.concatenate(
        [padc(params["brx"], Hp), padc(params["bx1"], Hp),
         padc(params["bux"], Hp)], axis=1)                                # (1, 3Hp) f32
    w_h = jnp.concatenate(
        [padc(padr(params["wrh_t"], Hp), Hp),
         padc(padr(params["wh1_t"], Hp), Hp),
         padc(padr(params["wuh_t"], Hp), Hp)], axis=1).astype(compute_dtype)  # (Hp, 3Hp)
    w_fc = padc(padr(params["wfc_t"], Hp), Cp).astype(compute_dtype)      # (Hp, Cp)
    b_fc = padc(params["bfc"], Cp)                                        # (1, Cp) f32

    return {"w_in": w_in, "b_in": b_in, "w_h": w_h, "w_fc": w_fc, "b_fc": b_fc,
            "H": H, "Hp": Hp, "C": C, "Cp": Cp, "compute_dtype": compute_dtype}


# ----------------------------------------------------------------------------
# Full forward pass.
# ----------------------------------------------------------------------------
def gru_forward(x, prep, *, seq_chunk=None, batch_tile=None):
    """x: (S, B, F) float32.  prep: output of prepare_params."""
    S, B, F = x.shape
    cdt = prep["compute_dtype"]
    Hp, Cp, C = prep["Hp"], prep["Cp"], prep["C"]

    # 1) Hoisted fused input projections -> bf16 gin (dominant HBM stream halved).
    gin = matmul_bias(x.reshape(S * B, F).astype(cdt), prep["w_in"], prep["b_in"],
                      out_dtype=cdt).reshape(S, B, 3 * Hp)

    # 2) Serial recurrence (fused hidden matmul + gating only on the critical path).
    hseq = gru_recurrence(gin, prep["w_h"], out_dtype=cdt,
                          seq_chunk=seq_chunk, batch_tile=batch_tile)

    # 3) Hoisted output head.
    out = matmul_bias(hseq.reshape(S * B, Hp), prep["w_fc"], prep["b_fc"],
                      out_dtype=jnp.float32).reshape(S, B, Cp)
    return out[:, :, :C]


# ----------------------------------------------------------------------------
# Pure-JAX reference replicating the PyTorch forward, with the same bf16
# rounding of MXU operands and of the stored gin/h streams so the check can be
# tight; gate math and the h carry stay in f32, as in the kernel.
# ----------------------------------------------------------------------------
def gru_reference(x, params, *, compute_dtype=jnp.bfloat16):
    rnd = lambda a: a.astype(compute_dtype).astype(jnp.float32)
    S, B, F = x.shape
    H = params["wrh_t"].shape[0]

    w_in = rnd(jnp.concatenate([params["wrx_t"], params["wx1_t"], params["wux_t"]], axis=1))
    b_in = jnp.concatenate([params["brx"], params["bx1"], params["bux"]], axis=1)
    w_h = rnd(jnp.concatenate([params["wrh_t"], params["wh1_t"], params["wuh_t"]], axis=1))
    w_fc = rnd(params["wfc_t"])
    b_fc = params["bfc"]

    gin = rnd(rnd(x).reshape(S * B, F) @ w_in + b_in).reshape(S, B, 3 * H)
    h = jnp.zeros((B, H), jnp.float32)
    outs = []
    for k in range(S):
        hh = rnd(h) @ w_h
        gr = jax.nn.sigmoid(gin[k, :, :H] + hh[:, :H])
        gu = jax.nn.sigmoid(gin[k, :, 2 * H:] + hh[:, 2 * H:])
        r = jnp.tanh(gr * hh[:, H:2 * H] + gin[k, :, H:2 * H])
        h = r * (1.0 - gu) + gu * h
        outs.append(rnd(h) @ w_fc + b_fc)
    return jnp.stack(outs, 0)


def init_params(key, feat_size, hidden_size, num_classes):
    """Deterministic synthetic parameters matching the nn.Linear layers.
    Stored pre-transposed: Linear(in, out) weight (out, in) -> kept as (in, out).
    Hidden-side projections (wrh/wh1/wuh) have bias=False, as in the module."""
    ks = jax.random.split(key, 12)
    u = lambda k, shape, fan_in: jax.random.uniform(
        k, shape, jnp.float32, -1.0 / jnp.sqrt(fan_in), 1.0 / jnp.sqrt(fan_in))
    F, H, C = feat_size, hidden_size, num_classes
    return {
        "wrx_t": u(ks[0], (F, H), F), "brx": u(ks[1], (1, H), F),
        "wrh_t": u(ks[2], (H, H), H),
        "wx1_t": u(ks[3], (F, H), F), "bx1": u(ks[4], (1, H), F),
        "wh1_t": u(ks[5], (H, H), H),
        "wux_t": u(ks[6], (F, H), F), "bux": u(ks[7], (1, H), F),
        "wuh_t": u(ks[8], (H, H), H),
        "wfc_t": u(ks[9], (H, C), H), "bfc": u(ks[10], (1, C), H),
    }


if __name__ == "__main__":
    SEQ, BATCH, FEAT, HIDDEN = 8, 2, 4, 32
    NUM_CLASSES = FEAT + 1  # num_classes=None path in the module

    key = jax.random.PRNGKey(0)
    kx, kp = jax.random.split(key)
    x = jax.random.normal(kx, (SEQ, BATCH, FEAT), jnp.float32)
    params = init_params(kp, FEAT, HIDDEN, NUM_CLASSES)
    prep = prepare_params(params)          # one-time fuse/pad/cast (hoisted)

    out = gru_forward(x, prep)
    out = jax.block_until_ready(out)

    ref = gru_reference(x, params)
    assert out.shape == (SEQ, BATCH, NUM_CLASSES)
    # bf16 MXU operands / bf16 gin & h streams (identically rounded in the
    # reference) + hardware transcendentals -> modest tolerance.
    assert jnp.allclose(out, ref, atol=5e-3, rtol=1e-2), "mismatch vs JAX reference"

    print("KERNEL_OK")
</pallas_src>

<mosaic_0001>
module attributes {stable_mosaic.version = 11 : i64} {
  func.func @_matmul_bias_kernel(%arg0: i32, %arg1: i32, %arg2: memref<16x4xbf16, #tpu.memory_space<vmem>>, %arg3: memref<4x384xbf16, #tpu.memory_space<vmem>>, %arg4: memref<1x384xf32, #tpu.memory_space<vmem>>, %arg5: memref<16x384xbf16, #tpu.memory_space<vmem>>) attributes {dimension_semantics = [#tpu.dimension_semantics<parallel>, #tpu.dimension_semantics<parallel>], iteration_bounds = array<i64: 1, 1>, scalar_prefetch = 0 : i64, scratch_operands = 0 : i64, tpu.core_type = #tpu.core_type<tc>, window_params = [{transform_indices = @transform_0, window_bounds = array<i64: 16, 4>}, {pipeline_mode = #tpu.pipeline_mode<synchronous>, transform_indices = @transform_1, window_bounds = array<i64: 4, 384>}, {pipeline_mode = #tpu.pipeline_mode<synchronous>, transform_indices = @transform_2, window_bounds = array<i64: 1, 384>}, {transform_indices = @transform_3, window_bounds = array<i64: 16, 384>}]} {
    %c0 = arith.constant 0 : index
    %c0_0 = arith.constant 0 : index
    %0 = vector.load %arg2[%c0, %c0_0] : memref<16x4xbf16, #tpu.memory_space<vmem>>, vector<16x4xbf16>
    %c0_1 = arith.constant 0 : index
    %c0_2 = arith.constant 0 : index
    %1 = vector.load %arg3[%c0_1, %c0_2] : memref<4x384xbf16, #tpu.memory_space<vmem>>, vector<4x384xbf16>
    %cst = arith.constant dense<0.000000e+00> : vector<16x384xf32>
    %2 = tpu.matmul %0, %1, %cst {dimension_numbers = #tpu.dot_dimension_numbers<[1], [0], [0], [1], [0, 0, 1, 1], [], []>} : vector<16x4xbf16>, vector<4x384xbf16>, vector<16x384xf32> -> vector<16x384xf32>
    %c0_3 = arith.constant 0 : index
    %c0_4 = arith.constant 0 : index
    %3 = vector.load %arg4[%c0_3, %c0_4] : memref<1x384xf32, #tpu.memory_space<vmem>>, vector<1x384xf32>
    %4 = vector.broadcast %3 : vector<1x384xf32> to vector<16x384xf32>
    %5 = arith.addf %2, %4 : vector<16x384xf32>
    %6 = arith.truncf %5 : vector<16x384xf32> to vector<16x384xbf16>
    %c0_5 = arith.constant 0 : index
    %c0_6 = arith.constant 0 : index
    %7 = vector.load %arg5[%c0_5, %c0_6] : memref<16x384xbf16, #tpu.memory_space<vmem>>, vector<16x384xbf16>
    tpu.vector_store %arg5[%c0_5, %c0_6], %6 {strides = array<i32>} : memref<16x384xbf16, #tpu.memory_space<vmem>>, vector<16x384xbf16>,
    return
  }
  func.func @transform_0(%arg0: i32, %arg1: i32) -> (i32, i32) {
    %c0_i32 = arith.constant 0 : i32
    %c0_i32_0 = arith.constant 0 : i32
    return %arg0, %c0_i32 : i32, i32
  }
  func.func @transform_1(%arg0: i32, %arg1: i32) -> (i32, i32) {
    %c0_i32 = arith.constant 0 : i32
    %c0_i32_0 = arith.constant 0 : i32
    return %c0_i32, %arg1 : i32, i32
  }
  func.func @transform_2(%arg0: i32, %arg1: i32) -> (i32, i32) {
    %c0_i32 = arith.constant 0 : i32
    %c0_i32_0 = arith.constant 0 : i32
    return %c0_i32, %arg1 : i32, i32
  }
  func.func @transform_3(%arg0: i32, %arg1: i32) -> (i32, i32) {
    %c0_i32 = arith.constant 0 : i32
    return %arg0, %arg1 : i32, i32
  }
}

module attributes {stable_mosaic.version = 11 : i64} {
  func.func @_matmul_bias_kernel(%arg0: i32, %arg1: i32, %arg2: memref<16x4xbf16, #tpu.memory_space<vmem>>, %arg3: memref<4x384xbf16, #tpu.memory_space<vmem>>, %arg4: memref<1x384xf32, #tpu.memory_space<vmem>>, %arg5: memref<16x384xbf16, #tpu.memory_space<vmem>>) attributes {dimension_semantics = [#tpu.dimension_semantics<parallel>, #tpu.dimension_semantics<parallel>], iteration_bounds = array<i64: 1, 1>, scalar_prefetch = 0 : i64, scratch_operands = 0 : i64, tpu.core_type = #tpu.core_type<tc>, window_params = [{transform_indices = @transform_0, window_bounds = array<i64: 16, 4>}, {transform_indices = @transform_1, window_bounds = array<i64: 4, 384>}, {transform_indices = @transform_2, window_bounds = array<i64: 1, 384>}, {transform_indices = @transform_3, window_bounds = array<i64: 16, 384>}]} {
    %c0 = arith.constant 0 : index
    %c0_0 = arith.constant 0 : index
    %0 = vector.load %arg2[%c0, %c0_0] : memref<16x4xbf16, #tpu.memory_space<vmem>>, vector<16x4xbf16>
    %c0_1 = arith.constant 0 : index
    %c0_2 = arith.constant 0 : index
    %1 = vector.load %arg3[%c0_1, %c0_2] : memref<4x384xbf16, #tpu.memory_space<vmem>>, vector<4x384xbf16>
    %cst = arith.constant dense<0.000000e+00> : vector<16x384xf32>
    %2 = tpu.matmul %0, %1, %cst {dimension_numbers = #tpu.dot_dimension_numbers<[1], [0], [0], [1], [0, 0, 1, 1], [], []>} : vector<16x4xbf16>, vector<4x384xbf16>, vector<16x384xf32> -> vector<16x384xf32>
    %c0_3 = arith.constant 0 : index
    %c0_4 = arith.constant 0 : index
    %3 = vector.load %arg4[%c0_3, %c0_4] : memref<1x384xf32, #tpu.memory_space<vmem>>, vector<1x384xf32>
    %4 = vector.broadcast %3 : vector<1x384xf32> to vector<16x384xf32>
    %5 = arith.addf %2, %4 : vector<16x384xf32>
    %6 = arith.truncf %5 : vector<16x384xf32> to vector<16x384xbf16>
    %c0_5 = arith.constant 0 : index
    %c0_6 = arith.constant 0 : index
    %7 = vector.load %arg5[%c0_5, %c0_6] : memref<16x384xbf16, #tpu.memory_space<vmem>>, vector<16x384xbf16>
    tpu.vector_store %arg5[%c0_5, %c0_6], %6 {strides = array<i32>} : memref<16x384xbf16, #tpu.memory_space<vmem>>, vector<16x384xbf16>,
    return
  }
  func.func @transform_0(%arg0: i32, %arg1: i32) -> (i32, i32) {
    %c0_i32 = arith.constant 0 : i32
    %c0_i32_0 = arith.constant 0 : i32
    return %arg0, %c0_i32 : i32, i32
  }
  func.func @transform_1(%arg0: i32, %arg1: i32) -> (i32, i32) {
    %c0_i32 = arith.constant 0 : i32
    %c0_i32_0 = arith.constant 0 : i32
    return %c0_i32, %arg1 : i32, i32
  }
  func.func @transform_2(%arg0: i32, %arg1: i32) -> (i32, i32) {
    %c0_i32 = arith.constant 0 : i32
    %c0_i32_0 = arith.constant 0 : i32
    return %c0_i32, %arg1 : i32, i32
  }
  func.func @transform_3(%arg0: i32, %arg1: i32) -> (i32, i32) {
    %c0_i32 = arith.constant 0 : i32
    return %arg0, %arg1 : i32, i32
  }
}

</mosaic_0001>

<llo_original>
// kernel: tpu_custom_call.1
$region0: #{tpu_custom_call.1}
  #allocation0 [shape = 'u32[]', space=smem, size = 0x4, offset = 0x4, fixed_abs, tag = 'smem constant byte address 0x4 - core index']
  #allocation1 [shape = 'u32[144,128]{1,0:T(1,128)}', space=vmem, size = 0x12000, scoped, tag = 'internal scratch']
  %s0 = inlined_call_operand.hbm [shape: bf16[16,4], index: 0, kind: input, shape index: {}]
  %s1 = inlined_call_operand.hbm [shape: bf16[4,384], index: 1, kind: input, shape index: {}]
  %s2 = inlined_call_operand.hbm [shape: f32[1,384], index: 2, kind: input, shape index: {}]
  %s3 = inlined_call_operand.hbm [shape: bf16[16,384], index: 3, kind: output, shape index: {}]
  %s4 = sld [smem:[#allocation0]]
  $region34: #{tpu_custom_call.1} parent=0
    _
  %s6 = ssub.s32 1, %s4
  %s7 = scalar_select 0, %s6, %s4
  $region1: #{tpu_custom_call.1} parent=0
    #allocation2 [shape = 'u8[4096]{0}', space=vmem, size = 0x1000, scoped, tag = 'input window, operand 0, single buffered']
    #allocation3 [shape = 's32[1]{0}', space=sflag, size = 0x4, scoped, tag = 'scoped memory for tpu_custom_call.1']
    #allocation4 [shape = 's32[1]{0}', space=sflag, size = 0x4, scoped, tag = 'scoped memory for tpu_custom_call.1']
    #allocation5 [shape = 'u8[3072]{0}', space=vmem, size = 0xc00, scoped, tag = 'input window, operand 1, single buffered']
    #allocation6 [shape = 's32[1]{0}', space=sflag, size = 0x4, scoped, tag = 'scoped memory for tpu_custom_call.1']
    #allocation7 [shape = 'u8[1536]{0}', space=vmem, size = 0x800, scoped, tag = 'input window, operand 2, single buffered']
    #allocation8 [shape = 'u8[12288]{0}', space=vmem, size = 0x3000, scoped, tag = 'output window, operand 0, single buffered']
    %8 = vsyncpa [#allocation3], 0
    %9 = vsyncpa [#allocation6], 0
    %10 = vsyncpa [#allocation4], 0
    // Predicated region
    $region2: #{tpu_custom_call.1} parent=1 // pred_check
      _
    $region3: #{tpu_custom_call.1} parent=1 // pred_check_branch
      %12 = sbr.rel (0) target = $region5
    $region4: #{tpu_custom_call.1} parent=1 // pred_region
      %s14 = ssub.s32 128, 128
      %15 = vsyncadd [#allocation3], %s14
      %s16 = sshll.u32 [#allocation2], 4
      %s17 = int_to_ptr.vmem [resolvable:$true] %s16
      %22 = dma.hbm_to_vmem [thread:$0]  %s0, 128, %s17, [#allocation3], 64, 64, 4
    $region5: #{tpu_custom_call.1} parent=1 // pred_fallthru
      _
    // Predicated region
    $region6: #{tpu_custom_call.1} parent=1 // pred_check
      _
    $region7: #{tpu_custom_call.1} parent=1 // pred_check_branch
      %24 = sbr.rel (0) target = $region9
    $region8: #{tpu_custom_call.1} parent=1 // pred_region
      %s26 = ssub.s32 96, 96
      %27 = vsyncadd [#allocation6], %s26
      %s29 = sshll.u32 [#allocation5], 4
      %s30 = int_to_ptr.vmem [resolvable:$true] %s29
      %32 = dma.hbm_to_vmem [thread:$0]  %s1, 96, %s30, [#allocation6]
    $region9: #{tpu_custom_call.1} parent=1 // pred_fallthru
      _
    // Predicated region
    $region10: #{tpu_custom_call.1} parent=1 // pred_check
      _
    $region11: #{tpu_custom_call.1} parent=1 // pred_check_branch
      %34 = sbr.rel (0) target = $region13
    $region12: #{tpu_custom_call.1} parent=1 // pred_region
      %s36 = ssub.s32 48, 48
      %37 = vsyncadd [#allocation6], %s36
      %s39 = sshll.u32 [#allocation7], 4
      %s40 = int_to_ptr.vmem [resolvable:$true] %s39
      %42 = dma.hbm_to_vmem [thread:$0]  %s2, 48, %s40, [#allocation6]
    $region13: #{tpu_custom_call.1} parent=1 // pred_fallthru
      _
    // Predicated region
    $region14: #{tpu_custom_call.1} parent=1 // pred_check
      _
    $region15: #{tpu_custom_call.1} parent=1 // pred_check_branch
      %44 = sbr.rel (0) target = $region17
    $region16: #{tpu_custom_call.1} parent=1 // pred_region
      %45 = dma.done [#allocation3], 128
    $region17: #{tpu_custom_call.1} parent=1 // pred_fallthru
      _
    // Predicated region
    $region18: #{tpu_custom_call.1} parent=1 // pred_check
      _
    $region19: #{tpu_custom_call.1} parent=1 // pred_check_branch
      %47 = sbr.rel (0) target = $region21
    $region20: #{tpu_custom_call.1} parent=1 // pred_region
      %48 = dma.done [#allocation6], 96
    $region21: #{tpu_custom_call.1} parent=1 // pred_fallthru
      _
    // Predicated region
    $region22: #{tpu_custom_call.1} parent=1 // pred_check
      _
    $region23: #{tpu_custom_call.1} parent=1 // pred_check_branch
      %50 = sbr.rel (0) target = $region25
    $region24: #{tpu_custom_call.1} parent=1 // pred_region
      %51 = dma.done [#allocation6], 48
    $region25: #{tpu_custom_call.1} parent=1 // pred_fallthru
      _
    %v53 = vld [vmem:[#allocation2] sm:$0xf]
    %v54 = vld [vmem:[#allocation2 + $0x4] sm:$0xf]
    %v55 = vld [vmem:[#allocation5] sm:$0x3f]
    %v56 = vld [vmem:[#allocation7] sm:$0x7]
    %v58 = vlaneseq
    %v59 = vshrl.u32 %v58, 7
    %v60 = vsub.s32 0, %v59
    %v61 = vrot.slane %v56, %v60
    %v62 = vlaneseq
    %v63 = vshrl.u32 %v62, 7
    %v64 = vsub.s32 1, %v63
    %v65 = vrot.slane %v56, %v64
    %v66 = vlaneseq
    %v67 = vshrl.u32 %v66, 7
    %v68 = vsub.s32 2, %v67
    %v69 = vrot.slane %v56, %v68
    %v75 = vunpack.c.l.b16 %v53
    %v76 = vunpack.c.l.b16 %v54
    %v77 = vpack.c.b16 %v76, %v75
    %v79 = vcombine.high %v55, %v55
    %v81 = vunpack.c.l.s4 1983009808
    %v82 = vunpack.c.0.s8 %v81
    %v83 = vlaneseq
    %v84 = vshrl.u32 %v83, 7
    %v85 = vsub.s32 %v82, %v84
    %v86 = vrot.slane %v55, %v85
    %v88 = vunpack.c.l.s4 1983009808
    %v89 = vunpack.c.0.s8 %v88
    %v90 = vlaneseq
    %v91 = vshrl.u32 %v90, 7
    %v92 = vsub.s32 %v89, %v91
    %v93 = vrot.slane %v79, %v92
    %v94 = vcombine.high %v86, %v86
    %vm95 = vcmask 31744
    %v97 = vsel %vm95, %v77, 0
    %vm99 = vcmask 1041408
    %v101 = vsel %vm99, %v86, 0
    %v104 = vsel %vm99, %v94, 0
    %v107 = vsel %vm99, %v93, 0
    %109 = vmatprep.subr.bf16.mxu0 %v104
    %110 = vmatpush1.bf16.msra.mxu0 %v101
    %111 = vmatprep.subr.bf16.mxu0 0
    %112 = vmatpush1.bf16.msra.mxu0 0
    %113 = vmatprep.subr.bf16.mxu0 0
    %114 = vmatpush1.bf16.msra.mxu0 0
    %115 = vmatprep.subr.bf16.mxu0 0
    %116 = vmatpush1.bf16.msra.mxu0 0
    %117 = vmatprep.subr.bf16.mxu0 0
    %118 = vmatpush1.bf16.msra.mxu0 0
    %119 = vmatprep.subr.bf16.mxu0 0
    %120 = vmatpush1.bf16.msra.mxu0 0
    %121 = vmatprep.subr.bf16.mxu0 0
    %122 = vmatpush1.bf16.msra.mxu0 0
    %123 = vmatprep.subr.bf16.mxu0 0
    %124 = vmatpush1.bf16.msra.mxu0 0
    %125 = vmatprep.subr.bf16.mxu0 0
    %126 = vmatpush1.bf16.msra.mxu0 0
    %127 = vmatprep.subr.bf16.mxu0 0
    %128 = vmatpush1.bf16.msra.mxu0 0
    %129 = vmatprep.subr.bf16.mxu0 0
    %130 = vmatpush1.bf16.msra.mxu0 0
    %131 = vmatprep.subr.bf16.mxu0 0
    %132 = vmatpush1.bf16.msra.mxu0 0
    %133 = vmatprep.subr.bf16.mxu0 0
    %134 = vmatpush1.bf16.msra.mxu0 0
    %135 = vmatprep.subr.bf16.mxu0 0
    %136 = vmatpush1.bf16.msra.mxu0 0
    %137 = vmatprep.subr.bf16.mxu0 0
    %138 = vmatpush1.bf16.msra.mxu0 0
    %139 = vmatprep.subr.bf16.mxu0 0
    %140 = vmatpush1.bf16.msra.mxu0 0
    %141 = vmatprep.mubr.bf16.mxu0 0
    %142 = vmatmul.mubr.bf16.gmra.mrb[0].mxu0 %v97
    %v143 = vpop.f32.mrb[0].mxu0
    %v144 = vadd.f32 %v61, %v143
    %v145 = vpop.f32.mrb[0].mxu0
    %v146 = vadd.f32 %v65, %v145
    %v147 = vpop.f32.mrb[0].mxu0
    %v148 = vadd.f32 %v61, %v147
    %v149 = vpop.f32.mrb[0].mxu0
    %v150 = vadd.f32 %v65, %v149
    %151 = vdwg.mxu0
    %152 = vmatprep.subr.bf16.mxu0 0
    %153 = vmatpush1.bf16.msra.mxu0 %v107
    %154 = vmatprep.subr.bf16.mxu0 0
    %155 = vmatpush1.bf16.msra.mxu0 0
    %156 = vmatprep.subr.bf16.mxu0 0
    %157 = vmatpush1.bf16.msra.mxu0 0
    %158 = vmatprep.subr.bf16.mxu0 0
    %159 = vmatpush1.bf16.msra.mxu0 0
    %160 = vmatprep.subr.bf16.mxu0 0
    %161 = vmatpush1.bf16.msra.mxu0 0
    %162 = vmatprep.subr.bf16.mxu0 0
    %163 = vmatpush1.bf16.msra.mxu0 0
    %164 = vmatprep.subr.bf16.mxu0 0
    %165 = vmatpush1.bf16.msra.mxu0 0
    %166 = vmatprep.subr.bf16.mxu0 0
    %167 = vmatpush1.bf16.msra.mxu0 0
    %168 = vmatprep.subr.bf16.mxu0 0
    %169 = vmatpush1.bf16.msra.mxu0 0
    %170 = vmatprep.subr.bf16.mxu0 0
    %171 = vmatpush1.bf16.msra.mxu0 0
    %172 = vmatprep.subr.bf16.mxu0 0
    %173 = vmatpush1.bf16.msra.mxu0 0
    %174 = vmatprep.subr.bf16.mxu0 0
    %175 = vmatpush1.bf16.msra.mxu0 0
    %176 = vmatprep.subr.bf16.mxu0 0
    %177 = vmatpush1.bf16.msra.mxu0 0
    %178 = vmatprep.subr.bf16.mxu0 0
    %179 = vmatpush1.bf16.msra.mxu0 0
    %180 = vmatprep.subr.bf16.mxu0 0
    %181 = vmatpush1.bf16.msra.mxu0 0
    %182 = vmatprep.subr.bf16.mxu0 0
    %183 = vmatpush1.bf16.msra.mxu0 0
    %184 = vmatprep.mubr.bf16.mxu0 0
    %185 = vmatmul.mubr.bf16.gmra.mrb[0].mxu0 %v97
    %v186 = vpop.f32.mrb[0].mxu0
    %v187 = vadd.f32 %v69, %v186
    %v188 = vpop.f32.mrb[0].mxu0
    %v189 = vpop.f32.mrb[0].mxu0
    %v190 = vadd.f32 %v69, %v189
    %v191 = vpop.f32.mrb[0].mxu0
    %192 = vdwg.mxu0
    %v193 = vpack.c.bf16 %v148, %v144
    %v194 = vpack.c.bf16 %v150, %v146
    %v195 = vpack.c.bf16 %v190, %v187
    %v199 = vunpack.c.l.b16 %v193
    %v200 = vunpack.c.l.b16 %v194
    %v201 = vunpack.c.l.b16 %v195
    %v202 = vunpack.c.h.b16 %v193
    %v203 = vunpack.c.h.b16 %v194
    %v204 = vunpack.c.h.b16 %v195
    %v205 = vpack.c.b16 %v200, %v199
    %v206 = vpack.c.b16 %v201, %v201
    %v207 = vpack.c.b16 %v203, %v202
    %v208 = vpack.c.b16 %v204, %v204
    %213 = vst [vmem:[#allocation8] sm:$0xff] %v205
    %214 = vst [vmem:[#allocation8 + $0x8] sm:$0xf] %v206
    %215 = vst [vmem:[#allocation8 + $0xc] sm:$0xff] %v207
    %216 = vst [vmem:[#allocation8 + $0x14] sm:$0xf] %v208
    // Predicated region
    $region26: #{tpu_custom_call.1} parent=1 // pred_check
      _
    $region27: #{tpu_custom_call.1} parent=1 // pred_check_branch
      %218 = sbr.rel (0) target = $region29
    $region28: #{tpu_custom_call.1} parent=1 // pred_region
      %s220 = ssub.s32 384, 384
      %221 = vsyncadd [#allocation4], %s220
      %s222 = sshll.u32 [#allocation8], 4
      %s223 = int_to_ptr.vmem [resolvable:$true] %s222
      %228 = dma.vmem_to_hbm [thread:$0]  %s223, 384, %s3, [#allocation4], 192, 192, 12
    $region29: #{tpu_custom_call.1} parent=1 // pred_fallthru
      _
    // Predicated region
    $region30: #{tpu_custom_call.1} parent=1 // pred_check
      _
    $region31: #{tpu_custom_call.1} parent=1 // pred_check_branch
      %230 = sbr.rel (0) target = $region33
    $region32: #{tpu_custom_call.1} parent=1 // pred_region
      %231 = dma.done [#allocation4], 384
    $region33: #{tpu_custom_call.1} parent=1 // pred_fallthru
      _
    %232 = vsyncpa [#allocation3], 1
    %233 = vsyncpa [#allocation6], 1
    %234 = vsyncpa [#allocation4], 1

// kernel: tpu_custom_call.1
$region0: #{tpu_custom_call.1}
  #allocation0 [shape = 'u32[]', space=smem, size = 0x4, offset = 0x4, fixed_abs, tag = 'smem constant byte address 0x4 - core index']
  #allocation1 [shape = 'u32[144,128]{1,0:T(1,128)}', space=vmem, size = 0x12000, scoped, tag = 'internal scratch']
  %s0 = inlined_call_operand.hbm [shape: bf16[16,4], index: 0, kind: input, shape index: {}]
  %s1 = inlined_call_operand.hbm [shape: bf16[4,384], index: 1, kind: input, shape index: {}]
  %s2 = inlined_call_operand.hbm [shape: f32[1,384], index: 2, kind: input, shape index: {}]
  %s3 = inlined_call_operand.hbm [shape: bf16[16,384], index: 3, kind: output, shape index: {}]
  %s4 = sld [smem:[#allocation0]]
  $region34: #{tpu_custom_call.1} parent=0
    _
  %s6 = ssub.s32 1, %s4
  %s7 = scalar_select 0, %s6, %s4
  $region1: #{tpu_custom_call.1} parent=0
    #allocation2 [shape = 'u8[4096]{0}', space=vmem, size = 0x1000, scoped, tag = 'input window, operand 0, single buffered']
    #allocation3 [shape = 's32[1]{0}', space=sflag, size = 0x4, scoped, tag = 'scoped memory for tpu_custom_call.1']
    #allocation4 [shape = 's32[1]{0}', space=sflag, size = 0x4, scoped, tag = 'scoped memory for tpu_custom_call.1']
    #allocation5 [shape = 'u8[3072]{0}', space=vmem, size = 0xc00, scoped, tag = 'input window, operand 1, single buffered']
    #allocation6 [shape = 's32[1]{0}', space=sflag, size = 0x4, scoped, tag = 'scoped memory for tpu_custom_call.1']
    #allocation7 [shape = 'u8[1536]{0}', space=vmem, size = 0x800, scoped, tag = 'input window, operand 2, single buffered']
    #allocation8 [shape = 'u8[12288]{0}', space=vmem, size = 0x3000, scoped, tag = 'output window, operand 0, single buffered']
    %8 = vsyncpa [#allocation3], 0
    %9 = vsyncpa [#allocation6], 0
    %10 = vsyncpa [#allocation4], 0
    // Predicated region
    $region2: #{tpu_custom_call.1} parent=1 // pred_check
      _
    $region3: #{tpu_custom_call.1} parent=1 // pred_check_branch
      %12 = sbr.rel (0) target = $region5
    $region4: #{tpu_custom_call.1} parent=1 // pred_region
      %s14 = ssub.s32 128, 128
      %15 = vsyncadd [#allocation3], %s14
      %s16 = sshll.u32 [#allocation2], 4
      %s17 = int_to_ptr.vmem [resolvable:$true] %s16
      %22 = dma.hbm_to_vmem [thread:$0]  %s0, 128, %s17, [#allocation3], 64, 64, 4
    $region5: #{tpu_custom_call.1} parent=1 // pred_fallthru
      _
    // Predicated region
    $region6: #{tpu_custom_call.1} parent=1 // pred_check
      _
    $region7: #{tpu_custom_call.1} parent=1 // pred_check_branch
      %24 = sbr.rel (0) target = $region9
    $region8: #{tpu_custom_call.1} parent=1 // pred_region
      %s26 = ssub.s32 96, 96
      %27 = vsyncadd [#allocation6], %s26
      %s29 = sshll.u32 [#allocation5], 4
      %s30 = int_to_ptr.vmem [resolvable:$true] %s29
      %32 = dma.hbm_to_vmem [thread:$0]  %s1, 96, %s30, [#allocation6]
    $region9: #{tpu_custom_call.1} parent=1 // pred_fallthru
      _
    // Predicated region
    $region10: #{tpu_custom_call.1} parent=1 // pred_check
      _
    $region11: #{tpu_custom_call.1} parent=1 // pred_check_branch
      %34 = sbr.rel (0) target = $region13
    $region12: #{tpu_custom_call.1} parent=1 // pred_region
      %s36 = ssub.s32 48, 48
      %37 = vsyncadd [#allocation6], %s36
      %s39 = sshll.u32 [#allocation7], 4
      %s40 = int_to_ptr.vmem [resolvable:$true] %s39
      %42 = dma.hbm_to_vmem [thread:$0]  %s2, 48, %s40, [#allocation6]
    $region13: #{tpu_custom_call.1} parent=1 // pred_fallthru
      _
    // Predicated region
    $region14: #{tpu_custom_call.1} parent=1 // pred_check
      _
    $region15: #{tpu_custom_call.1} parent=1 // pred_check_branch
      %44 = sbr.rel (0) target = $region17
    $region16: #{tpu_custom_call.1} parent=1 // pred_region
      %45 = dma.done [#allocation3], 128
    $region17: #{tpu_custom_call.1} parent=1 // pred_fallthru
      _
    // Predicated region
    $region18: #{tpu_custom_call.1} parent=1 // pred_check
      _
    $region19: #{tpu_custom_call.1} parent=1 // pred_check_branch
      %47 = sbr.rel (0) target = $region21
    $region20: #{tpu_custom_call.1} parent=1 // pred_region
      %48 = dma.done [#allocation6], 96
    $region21: #{tpu_custom_call.1} parent=1 // pred_fallthru
      _
    // Predicated region
    $region22: #{tpu_custom_call.1} parent=1 // pred_check
      _
    $region23: #{tpu_custom_call.1} parent=1 // pred_check_branch
      %50 = sbr.rel (0) target = $region25
    $region24: #{tpu_custom_call.1} parent=1 // pred_region
      %51 = dma.done [#allocation6], 48
    $region25: #{tpu_custom_call.1} parent=1 // pred_fallthru
      _
    %v53 = vld [vmem:[#allocation2] sm:$0xf]
    %v54 = vld [vmem:[#allocation2 + $0x4] sm:$0xf]
    %v55 = vld [vmem:[#allocation5] sm:$0x3f]
    %v56 = vld [vmem:[#allocation7] sm:$0x7]
    %v58 = vlaneseq
    %v59 = vshrl.u32 %v58, 7
    %v60 = vsub.s32 0, %v59
    %v61 = vrot.slane %v56, %v60
    %v62 = vlaneseq
    %v63 = vshrl.u32 %v62, 7
    %v64 = vsub.s32 1, %v63
    %v65 = vrot.slane %v56, %v64
    %v66 = vlaneseq
    %v67 = vshrl.u32 %v66, 7
    %v68 = vsub.s32 2, %v67
    %v69 = vrot.slane %v56, %v68
    %v75 = vunpack.c.l.b16 %v53
    %v76 = vunpack.c.l.b16 %v54
    %v77 = vpack.c.b16 %v76, %v75
    %v79 = vcombine.high %v55, %v55
    %v81 = vunpack.c.l.s4 1983009808
    %v82 = vunpack.c.0.s8 %v81
    %v83 = vlaneseq
    %v84 = vshrl.u32 %v83, 7
    %v85 = vsub.s32 %v82, %v84
    %v86 = vrot.slane %v55, %v85
    %v88 = vunpack.c.l.s4 1983009808
    %v89 = vunpack.c.0.s8 %v88
    %v90 = vlaneseq
    %v91 = vshrl.u32 %v90, 7
    %v92 = vsub.s32 %v89, %v91
    %v93 = vrot.slane %v79, %v92
    %v94 = vcombine.high %v86, %v86
    %vm95 = vcmask 31744
    %v97 = vsel %vm95, %v77, 0
    %vm99 = vcmask 1041408
    %v101 = vsel %vm99, %v86, 0
    %v104 = vsel %vm99, %v94, 0
    %v107 = vsel %vm99, %v93, 0
    %109 = vmatprep.subr.bf16.mxu0 %v104
    %110 = vmatpush1.bf16.msra.mxu0 %v101
    %111 = vmatprep.subr.bf16.mxu0 0
    %112 = vmatpush1.bf16.msra.mxu0 0
    %113 = vmatprep.subr.bf16.mxu0 0
    %114 = vmatpush1.bf16.msra.mxu0 0
    %115 = vmatprep.subr.bf16.mxu0 0
    %116 = vmatpush1.bf16.msra.mxu0 0
    %117 = vmatprep.subr.bf16.mxu0 0
    %118 = vmatpush1.bf16.msra.mxu0 0
    %119 = vmatprep.subr.bf16.mxu0 0
    %120 = vmatpush1.bf16.msra.mxu0 0
    %121 = vmatprep.subr.bf16.mxu0 0
    %122 = vmatpush1.bf16.msra.mxu0 0
    %123 = vmatprep.subr.bf16.mxu0 0
    %124 = vmatpush1.bf16.msra.mxu0 0
    %125 = vmatprep.subr.bf16.mxu0 0
    %126 = vmatpush1.bf16.msra.mxu0 0
    %127 = vmatprep.subr.bf16.mxu0 0
    %128 = vmatpush1.bf16.msra.mxu0 0
    %129 = vmatprep.subr.bf16.mxu0 0
    %130 = vmatpush1.bf16.msra.mxu0 0
    %131 = vmatprep.subr.bf16.mxu0 0
    %132 = vmatpush1.bf16.msra.mxu0 0
    %133 = vmatprep.subr.bf16.mxu0 0
    %134 = vmatpush1.bf16.msra.mxu0 0
    %135 = vmatprep.subr.bf16.mxu0 0
    %136 = vmatpush1.bf16.msra.mxu0 0
    %137 = vmatprep.subr.bf16.mxu0 0
    %138 = vmatpush1.bf16.msra.mxu0 0
    %139 = vmatprep.subr.bf16.mxu0 0
    %140 = vmatpush1.bf16.msra.mxu0 0
    %141 = vmatprep.mubr.bf16.mxu0 0
    %142 = vmatmul.mubr.bf16.gmra.mrb[0].mxu0 %v97
    %v143 = vpop.f32.mrb[0].mxu0
    %v144 = vadd.f32 %v61, %v143
    %v145 = vpop.f32.mrb[0].mxu0
    %v146 = vadd.f32 %v65, %v145
    %v147 = vpop.f32.mrb[0].mxu0
    %v148 = vadd.f32 %v61, %v147
    %v149 = vpop.f32.mrb[0].mxu0
    %v150 = vadd.f32 %v65, %v149
    %151 = vdwg.mxu0
    %152 = vmatprep.subr.bf16.mxu0 0
    %153 = vmatpush1.bf16.msra.mxu0 %v107
    %154 = vmatprep.subr.bf16.mxu0 0
    %155 = vmatpush1.bf16.msra.mxu0 0
    %156 = vmatprep.subr.bf16.mxu0 0
    %157 = vmatpush1.bf16.msra.mxu0 0
    %158 = vmatprep.subr.bf16.mxu0 0
    %159 = vmatpush1.bf16.msra.mxu0 0
    %160 = vmatprep.subr.bf16.mxu0 0
    %161 = vmatpush1.bf16.msra.mxu0 0
    %162 = vmatprep.subr.bf16.mxu0 0
    %163 = vmatpush1.bf16.msra.mxu0 0
    %164 = vmatprep.subr.bf16.mxu0 0
    %165 = vmatpush1.bf16.msra.mxu0 0
    %166 = vmatprep.subr.bf16.mxu0 0
    %167 = vmatpush1.bf16.msra.mxu0 0
    %168 = vmatprep.subr.bf16.mxu0 0
    %169 = vmatpush1.bf16.msra.mxu0 0
    %170 = vmatprep.subr.bf16.mxu0 0
    %171 = vmatpush1.bf16.msra.mxu0 0
    %172 = vmatprep.subr.bf16.mxu0 0
    %173 = vmatpush1.bf16.msra.mxu0 0
    %174 = vmatprep.subr.bf16.mxu0 0
    %175 = vmatpush1.bf16.msra.mxu0 0
    %176 = vmatprep.subr.bf16.mxu0 0
    %177 = vmatpush1.bf16.msra.mxu0 0
    %178 = vmatprep.subr.bf16.mxu0 0
    %179 = vmatpush1.bf16.msra.mxu0 0
    %180 = vmatprep.subr.bf16.mxu0 0
    %181 = vmatpush1.bf16.msra.mxu0 0
    %182 = vmatprep.subr.bf16.mxu0 0
    %183 = vmatpush1.bf16.msra.mxu0 0
    %184 = vmatprep.mubr.bf16.mxu0 0
    %185 = vmatmul.mubr.bf16.gmra.mrb[0].mxu0 %v97
    %v186 = vpop.f32.mrb[0].mxu0
    %v187 = vadd.f32 %v69, %v186
    %v188 = vpop.f32.mrb[0].mxu0
    %v189 = vpop.f32.mrb[0].mxu0
    %v190 = vadd.f32 %v69, %v189
    %v191 = vpop.f32.mrb[0].mxu0
    %192 = vdwg.mxu0
    %v193 = vpack.c.bf16 %v148, %v144
    %v194 = vpack.c.bf16 %v150, %v146
    %v195 = vpack.c.bf16 %v190, %v187
    %v199 = vunpack.c.l.b16 %v193
    %v200 = vunpack.c.l.b16 %v194
    %v201 = vunpack.c.l.b16 %v195
    %v202 = vunpack.c.h.b16 %v193
    %v203 = vunpack.c.h.b16 %v194
    %v204 = vunpack.c.h.b16 %v195
    %v205 = vpack.c.b16 %v200, %v199
    %v206 = vpack.c.b16 %v201, %v201
    %v207 = vpack.c.b16 %v203, %v202
    %v208 = vpack.c.b16 %v204, %v204
    %213 = vst [vmem:[#allocation8] sm:$0xff] %v205
    %214 = vst [vmem:[#allocation8 + $0x8] sm:$0xf] %v206
    %215 = vst [vmem:[#allocation8 + $0xc] sm:$0xff] %v207
    %216 = vst [vmem:[#allocation8 + $0x14] sm:$0xf] %v208
    // Predicated region
    $region26: #{tpu_custom_call.1} parent=1 // pred_check
      _
    $region27: #{tpu_custom_call.1} parent=1 // pred_check_branch
      %218 = sbr.rel (0) target = $region29
    $region28: #{tpu_custom_call.1} parent=1 // pred_region
      %s220 = ssub.s32 384, 384
      %221 = vsyncadd [#allocation4], %s220
      %s222 = sshll.u32 [#allocation8], 4
      %s223 = int_to_ptr.vmem [resolvable:$true] %s222
      %228 = dma.vmem_to_hbm [thread:$0]  %s223, 384, %s3, [#allocation4], 192, 192, 12
    $region29: #{tpu_custom_call.1} parent=1 // pred_fallthru
      _
    // Predicated region
    $region30: #{tpu_custom_call.1} parent=1 // pred_check
      _
    $region31: #{tpu_custom_call.1} parent=1 // pred_check_branch
      %230 = sbr.rel (0) target = $region33
    $region32: #{tpu_custom_call.1} parent=1 // pred_region
      %231 = dma.done [#allocation4], 384
    $region33: #{tpu_custom_call.1} parent=1 // pred_fallthru
      _
    %232 = vsyncpa [#allocation3], 1
    %233 = vsyncpa [#allocation6], 1
    %234 = vsyncpa [#allocation4], 1

</llo_original>
